<compile_context>
chip_gen: v7x
topology: tpu7x:2x2x1
jax: 0.10.0
libtpu: 0.0.40
codegen_flags: <defaults>
</compile_context>

<pallas_src>
import functools

import jax
import jax.numpy as jnp
from jax.experimental import pallas as pl
from jax.experimental.pallas import tpu as pltpu


# Default batch-tile (rows per grid step).  512-1024 rows already reach ~85%
# of HBM roofline, so 2048 costs nothing in throughput while leaving ample
# VMEM headroom on v5e (16 MiB scoped default), v6e (32 MiB) and v7x
# (64 MiB physical / 32 MiB scoped).
_TM_DEFAULT = 2048
# Below this batch size we use a single tile: dispatch overhead dominates and
# the whole x tile is tiny.
_SINGLE_TILE_MAX = 1024


def _round_up(x, m):
    return (x + m - 1) // m * m


def _mlp_kernel(x_ref, w1_ref, b1_ref, w2_ref, b2_ref, w3_ref, b3_ref, o_ref):
    """y = relu(relu(x@w1+b1)@w2+b2)@w3+b3 on one (tm, in_dim) batch tile."""
    cdt = w1_ref.dtype  # MXU input dtype (bf16 by default); accumulation is f32.
    # If x already streams in the compute dtype (bf16 producer), this astype
    # is a no-op and no full-tile cast temp is materialized in VMEM.
    x = x_ref[...].astype(cdt)
    h1 = jnp.dot(x, w1_ref[...], preferred_element_type=jnp.float32)
    h1 = jnp.maximum(h1 + b1_ref[...], 0.0)
    h2 = jnp.dot(h1.astype(cdt), w2_ref[...], preferred_element_type=jnp.float32)
    h2 = jnp.maximum(h2 + b2_ref[...], 0.0)
    out = jnp.dot(h2.astype(cdt), w3_ref[...], preferred_element_type=jnp.float32)
    o_ref[...] = (out + b3_ref[...]).astype(o_ref.dtype)


def _xavier_uniform(key, fan_in, fan_out, dtype=jnp.float32):
    # Matches torch.nn.init.xavier_uniform_'s distribution (explicit PRNG key,
    # not bitwise-identical to torch, which is fine).  Stored as (in, out).
    bound = (6.0 / (fan_in + fan_out)) ** 0.5
    return jax.random.uniform(key, (fan_in, fan_out), dtype=dtype,
                              minval=-bound, maxval=bound)


def init_mlp_params(key, hidden_dim, n_classes, grayscale_model=False):
    in_dim = 14 * 14 if grayscale_model else n_classes * 14 * 14
    k1, k2, k3 = jax.random.split(key, 3)
    return {
        "w1": _xavier_uniform(k1, in_dim, hidden_dim),
        "b1": jnp.zeros((1, hidden_dim), jnp.float32),
        "w2": _xavier_uniform(k2, hidden_dim, hidden_dim),
        "b2": jnp.zeros((1, hidden_dim), jnp.float32),
        "w3": _xavier_uniform(k3, hidden_dim, n_classes),
        "b3": jnp.zeros((1, n_classes), jnp.float32),
    }


@functools.partial(
    jax.jit, static_argnames=("grayscale_model", "compute_dtype", "tile_m"))
def mlp_forward_flat(x_flat, params, *, grayscale_model=False,
                     compute_dtype=jnp.bfloat16, tile_m=None):
    """Forward pass on pre-flattened input.

    x_flat: (B, n_classes*14*14), f32 or bf16.  Flattening (and, ideally, the
    bf16 cast) should happen at the data producer so no extra HBM relayout /
    cast pass runs in front of the HBM-bound kernel.
    Returns (B, n_classes) float32 logits.
    """
    B, flat_dim = x_flat.shape
    n_classes = params["w3"].shape[1]
    hidden = params["w2"].shape[0]

    w1 = params["w1"].astype(compute_dtype)
    if grayscale_model:
        # Fold the grayscale channel-sum into w1 (rows tiled across channels).
        w1 = jnp.tile(w1, (n_classes, 1))
    w2 = params["w2"].astype(compute_dtype)
    w3 = params["w3"].astype(compute_dtype)
    b1, b2, b3 = params["b1"], params["b2"], params["b3"]

    in_dim = w1.shape[0]
    if flat_dim != in_dim:
        raise ValueError(
            f"x_flat has {flat_dim} features but (tiled) w1 expects {in_dim}; "
            f"check that params were built with the same grayscale_model flag.")

    # ---- batch tile selection ---------------------------------------------
    if tile_m is None:
        if B <= _SINGLE_TILE_MAX:
            tm = B  # single tile; block dims equal array dims -> no (8,128) issue
        else:
            # At least two grid steps so ("parallel",) actually splits the
            # batch across both v7x TensorCores; capped at _TM_DEFAULT to stay
            # inside every generation's scoped-VMEM budget.
            tm = min(_TM_DEFAULT, _round_up((B + 1) // 2, 8))
    else:
        tm = min(tile_m, B)
    if tm < B and tm % 8 != 0:
        raise ValueError("batch tile must be a multiple of 8 (sublane) unless "
                         "it covers the whole batch")
    grid = (pl.cdiv(B, tm),)

    x_spec = pl.BlockSpec((tm, in_dim), lambda i: (i, 0))
    out_spec = pl.BlockSpec((tm, n_classes), lambda i: (i, 0))
    # Constant block index -> weights/biases are DMA'd once and stay
    # VMEM-resident across all grid steps.  (They total well under 1 MiB, so
    # single-buffering them via pipeline_mode is skipped: the dead second
    # buffer costs a few hundred KiB, negligible next to the 32 MiB budget.)
    resident = lambda shape: pl.BlockSpec(shape, lambda i: (0, 0))

    # Advisory cost hint so XLA schedules the surrounding glue sensibly.
    weight_bytes = sum(int(a.size) * a.dtype.itemsize
                       for a in (w1, b1, w2, b2, w3, b3))
    cost = pl.CostEstimate(
        flops=2 * B * (in_dim * hidden + hidden * hidden + hidden * n_classes),
        transcendentals=0,
        bytes_accessed=int(x_flat.size) * x_flat.dtype.itemsize
        + B * n_classes * 4 + weight_bytes,
    )

    return pl.pallas_call(
        _mlp_kernel,
        out_shape=jax.ShapeDtypeStruct((B, n_classes), jnp.float32),
        grid=grid,
        in_specs=[
            x_spec,
            resident(w1.shape), resident(b1.shape),
            resident(w2.shape), resident(b2.shape),
            resident(w3.shape), resident(b3.shape),
        ],
        out_specs=out_spec,
        compiler_params=pltpu.CompilerParams(
            # Independent batch tiles -> megacore sharding on v7x.
            dimension_semantics=("parallel",),
            # Make the budget explicit: peak ~15 MiB at tm=2048 (padded x
            # double buffer + bf16 cast temp + 128-lane-padded out buffers +
            # weights).  32 MiB is safe on v5e/v6e/v7x.
            vmem_limit_bytes=32 * 1024 * 1024,
        ),
        cost_estimate=cost,
    )(x_flat, w1, b1, w2, b2, w3, b3)


def mlp_forward(x_nchw, params, *, grayscale_model=False,
                compute_dtype=jnp.bfloat16, tile_m=None):
    """Module-shaped convenience entry: x_nchw is (B, n_classes, 14, 14).

    Prefer calling `mlp_forward_flat` with data that is already flat (and
    bf16) at the producer — the reshape here costs a full HBM relayout pass
    over x, which is the dominant stream of this HBM-bound kernel.
    """
    B = x_nchw.shape[0]
    x_flat = x_nchw.reshape(B, -1)
    return mlp_forward_flat(x_flat, params, grayscale_model=grayscale_model,
                            compute_dtype=compute_dtype, tile_m=tile_m)


def _reference_forward(x_nchw, params, *, grayscale_model=False):
    # Pure-JAX f32 reference matching the PyTorch module semantics.
    B = x_nchw.shape[0]
    n_classes = params["w3"].shape[1]
    if grayscale_model:
        out = x_nchw.reshape(B, n_classes, 14 * 14).sum(axis=1)
    else:
        out = x_nchw.reshape(B, -1)
    h1 = jnp.maximum(out @ params["w1"] + params["b1"], 0.0)
    h2 = jnp.maximum(h1 @ params["w2"] + params["b2"], 0.0)
    return h2 @ params["w3"] + params["b3"]


if __name__ == "__main__":
    key = jax.random.PRNGKey(0)
    k_x, k_x2, k_p, k_pg = jax.random.split(key, 4)

    n_classes = 2      # colored MNIST: 2 classes / 2 color channels
    hidden_dim = 32
    params = init_mlp_params(k_p, hidden_dim, n_classes, grayscale_model=False)
    params_gray = init_mlp_params(k_pg, hidden_dim, n_classes,
                                  grayscale_model=True)

    # Module-shaped input; flatten once at the producer.
    x = jax.random.normal(k_x, (2, n_classes, 14, 14), dtype=jnp.float32)
    x_flat = x.reshape(x.shape[0], -1)

    # --- Test 1: tiny batch, non-grayscale, bf16 compute (default) ----------
    logits = jax.block_until_ready(mlp_forward_flat(x_flat, params))
    ref = _reference_forward(x, params)
    assert logits.shape == (2, n_classes)
    assert jnp.allclose(logits, ref, atol=1e-1, rtol=1e-1), \
        "mismatch vs reference (bf16, non-grayscale)"

    # --- Test 1b: NCHW convenience wrapper gives the same result ------------
    logits_nchw = jax.block_until_ready(mlp_forward(x, params))
    assert jnp.allclose(logits_nchw, logits), "NCHW wrapper mismatch"

    # --- Test 2: grayscale model (channel-sum folded into tiled w1) ---------
    logits_g = jax.block_until_ready(
        mlp_forward_flat(x_flat, params_gray, grayscale_model=True))
    ref_g = _reference_forward(x, params_gray, grayscale_model=True)
    assert jnp.allclose(logits_g, ref_g, atol=1e-1, rtol=1e-1), \
        "mismatch vs reference (bf16, grayscale)"

    # --- Test 3: multi-tile grid with ragged last tile, f32 compute ---------
    # Tolerance accounts for the reference matmuls running at XLA's default
    # (reduced) f32 matmul precision vs the kernel's MXU path.
    xb = jax.random.normal(k_x2, (20, n_classes, 14, 14), dtype=jnp.float32)
    xb_flat = xb.reshape(20, -1)
    logits_b = jax.block_until_ready(
        mlp_forward_flat(xb_flat, params, compute_dtype=jnp.float32, tile_m=8))
    ref_b = _reference_forward(xb, params)
    assert logits_b.shape == (20, n_classes)
    assert jnp.allclose(logits_b, ref_b, atol=2e-2, rtol=2e-2), \
        "mismatch vs reference (f32, multi-tile ragged grid)"

    # --- Test 4: bf16 x stream from the producer (halved HBM traffic) -------
    x_bf16 = x_flat.astype(jnp.bfloat16)   # stands in for a bf16 data producer
    logits_h = jax.block_until_ready(mlp_forward_flat(x_bf16, params))
    ref_h = _reference_forward(x_bf16.astype(jnp.float32).reshape(x.shape),
                               params)
    assert jnp.allclose(logits_h, ref_h, atol=1e-1, rtol=1e-1), \
        "mismatch vs reference (bf16 input stream)"

    print("KERNEL_OK")
</pallas_src>

<mosaic_0001>
module attributes {stable_mosaic.version = 11 : i64} {
  func.func @_mlp_kernel(%arg0: i32, %arg1: memref<2x392xf32, #tpu.memory_space<vmem>>, %arg2: memref<392x32xbf16, #tpu.memory_space<vmem>>, %arg3: memref<1x32xf32, #tpu.memory_space<vmem>>, %arg4: memref<32x32xbf16, #tpu.memory_space<vmem>>, %arg5: memref<1x32xf32, #tpu.memory_space<vmem>>, %arg6: memref<32x2xbf16, #tpu.memory_space<vmem>>, %arg7: memref<1x2xf32, #tpu.memory_space<vmem>>, %arg8: memref<2x2xf32, #tpu.memory_space<vmem>>) attributes {dimension_semantics = [#tpu.dimension_semantics<parallel>], iteration_bounds = array<i64: 1>, scalar_prefetch = 0 : i64, scratch_operands = 0 : i64, tpu.core_type = #tpu.core_type<tc>, window_params = [{transform_indices = @transform_0, window_bounds = array<i64: 2, 392>}, {pipeline_mode = #tpu.pipeline_mode<synchronous>, transform_indices = @transform_1, window_bounds = array<i64: 392, 32>}, {pipeline_mode = #tpu.pipeline_mode<synchronous>, transform_indices = @transform_2, window_bounds = array<i64: 1, 32>}, {pipeline_mode = #tpu.pipeline_mode<synchronous>, transform_indices = @transform_3, window_bounds = array<i64: 32, 32>}, {pipeline_mode = #tpu.pipeline_mode<synchronous>, transform_indices = @transform_4, window_bounds = array<i64: 1, 32>}, {pipeline_mode = #tpu.pipeline_mode<synchronous>, transform_indices = @transform_5, window_bounds = array<i64: 32, 2>}, {pipeline_mode = #tpu.pipeline_mode<synchronous>, transform_indices = @transform_6, window_bounds = array<i64: 1, 2>}, {transform_indices = @transform_7, window_bounds = array<i64: 2, 2>}]} {
    %c0 = arith.constant 0 : index
    %c0_0 = arith.constant 0 : index
    %0 = vector.load %arg1[%c0, %c0_0] : memref<2x392xf32, #tpu.memory_space<vmem>>, vector<2x392xf32>
    %1 = arith.truncf %0 : vector<2x392xf32> to vector<2x392xbf16>
    %c0_1 = arith.constant 0 : index
    %c0_2 = arith.constant 0 : index
    %2 = vector.load %arg2[%c0_1, %c0_2] : memref<392x32xbf16, #tpu.memory_space<vmem>>, vector<392x32xbf16>
    %cst = arith.constant dense<0.000000e+00> : vector<2x32xf32>
    %3 = tpu.matmul %1, %2, %cst {dimension_numbers = #tpu.dot_dimension_numbers<[1], [0], [0], [1], [0, 0, 1, 1], [], []>} : vector<2x392xbf16>, vector<392x32xbf16>, vector<2x32xf32> -> vector<2x32xf32>
    %c0_3 = arith.constant 0 : index
    %c0_4 = arith.constant 0 : index
    %4 = vector.load %arg3[%c0_3, %c0_4] : memref<1x32xf32, #tpu.memory_space<vmem>>, vector<1x32xf32>
    %5 = vector.broadcast %4 : vector<1x32xf32> to vector<2x32xf32>
    %6 = arith.addf %3, %5 : vector<2x32xf32>
    %cst_5 = arith.constant 0.000000e+00 : f32
    %7 = vector.broadcast %cst_5 : f32 to vector<2x32xf32>
    %8 = arith.maximumf %6, %7 : vector<2x32xf32>
    %9 = arith.truncf %8 : vector<2x32xf32> to vector<2x32xbf16>
    %c0_6 = arith.constant 0 : index
    %c0_7 = arith.constant 0 : index
    %10 = vector.load %arg4[%c0_6, %c0_7] : memref<32x32xbf16, #tpu.memory_space<vmem>>, vector<32x32xbf16>
    %cst_8 = arith.constant dense<0.000000e+00> : vector<2x32xf32>
    %11 = tpu.matmul %9, %10, %cst_8 {dimension_numbers = #tpu.dot_dimension_numbers<[1], [0], [0], [1], [0, 0, 1, 1], [], []>} : vector<2x32xbf16>, vector<32x32xbf16>, vector<2x32xf32> -> vector<2x32xf32>
    %c0_9 = arith.constant 0 : index
    %c0_10 = arith.constant 0 : index
    %12 = vector.load %arg5[%c0_9, %c0_10] : memref<1x32xf32, #tpu.memory_space<vmem>>, vector<1x32xf32>
    %13 = vector.broadcast %12 : vector<1x32xf32> to vector<2x32xf32>
    %14 = arith.addf %11, %13 : vector<2x32xf32>
    %cst_11 = arith.constant 0.000000e+00 : f32
    %15 = vector.broadcast %cst_11 : f32 to vector<2x32xf32>
    %16 = arith.maximumf %14, %15 : vector<2x32xf32>
    %17 = arith.truncf %16 : vector<2x32xf32> to vector<2x32xbf16>
    %c0_12 = arith.constant 0 : index
    %c0_13 = arith.constant 0 : index
    %18 = vector.load %arg6[%c0_12, %c0_13] : memref<32x2xbf16, #tpu.memory_space<vmem>>, vector<32x2xbf16>
    %cst_14 = arith.constant dense<0.000000e+00> : vector<2x2xf32>
    %19 = tpu.matmul %17, %18, %cst_14 {dimension_numbers = #tpu.dot_dimension_numbers<[1], [0], [0], [1], [0, 0, 1, 1], [], []>} : vector<2x32xbf16>, vector<32x2xbf16>, vector<2x2xf32> -> vector<2x2xf32>
    %c0_15 = arith.constant 0 : index
    %c0_16 = arith.constant 0 : index
    %20 = vector.load %arg7[%c0_15, %c0_16] : memref<1x2xf32, #tpu.memory_space<vmem>>, vector<1x2xf32>
    %21 = vector.broadcast %20 : vector<1x2xf32> to vector<2x2xf32>
    %22 = arith.addf %19, %21 : vector<2x2xf32>
    %c0_17 = arith.constant 0 : index
    %c0_18 = arith.constant 0 : index
    %23 = vector.load %arg8[%c0_17, %c0_18] : memref<2x2xf32, #tpu.memory_space<vmem>>, vector<2x2xf32>
    tpu.vector_store %arg8[%c0_17, %c0_18], %22 {strides = array<i32>} : memref<2x2xf32, #tpu.memory_space<vmem>>, vector<2x2xf32>,
    return
  }
  func.func @transform_0(%arg0: i32) -> (i32, i32) {
    %c0_i32 = arith.constant 0 : i32
    %c0_i32_0 = arith.constant 0 : i32
    return %arg0, %c0_i32 : i32, i32
  }
  func.func @transform_1(%arg0: i32) -> (i32, i32) {
    %c0_i32 = arith.constant 0 : i32
    %c0_i32_0 = arith.constant 0 : i32
    %c0_i32_1 = arith.constant 0 : i32
    return %c0_i32, %c0_i32_0 : i32, i32
  }
  func.func @transform_2(%arg0: i32) -> (i32, i32) {
    %c0_i32 = arith.constant 0 : i32
    %c0_i32_0 = arith.constant 0 : i32
    %c0_i32_1 = arith.constant 0 : i32
    return %c0_i32, %c0_i32_0 : i32, i32
  }
  func.func @transform_3(%arg0: i32) -> (i32, i32) {
    %c0_i32 = arith.constant 0 : i32
    %c0_i32_0 = arith.constant 0 : i32
    %c0_i32_1 = arith.constant 0 : i32
    return %c0_i32, %c0_i32_0 : i32, i32
  }
  func.func @transform_4(%arg0: i32) -> (i32, i32) {
    %c0_i32 = arith.constant 0 : i32
    %c0_i32_0 = arith.constant 0 : i32
    %c0_i32_1 = arith.constant 0 : i32
    return %c0_i32, %c0_i32_0 : i32, i32
  }
  func.func @transform_5(%arg0: i32) -> (i32, i32) {
    %c0_i32 = arith.constant 0 : i32
    %c0_i32_0 = arith.constant 0 : i32
    %c0_i32_1 = arith.constant 0 : i32
    return %c0_i32, %c0_i32_0 : i32, i32
  }
  func.func @transform_6(%arg0: i32) -> (i32, i32) {
    %c0_i32 = arith.constant 0 : i32
    %c0_i32_0 = arith.constant 0 : i32
    %c0_i32_1 = arith.constant 0 : i32
    return %c0_i32, %c0_i32_0 : i32, i32
  }
  func.func @transform_7(%arg0: i32) -> (i32, i32) {
    %c0_i32 = arith.constant 0 : i32
    %c0_i32_0 = arith.constant 0 : i32
    return %arg0, %c0_i32 : i32, i32
  }
}

</mosaic_0001>

<llo_original>
// kernel: mlp_forward_flat.1
$region0: #{mlp_forward_flat.1}
  #allocation0 [shape = 'u32[]', space=smem, size = 0x4, offset = 0x4, fixed_abs, tag = 'smem constant byte address 0x4 - core index']
  #allocation1 [shape = 'u32[144,128]{1,0:T(1,128)}', space=vmem, size = 0x12000, scoped, tag = 'internal scratch']
  %s0 = inlined_call_operand.vmem [shape: f32[2,392], index: 0, kind: input, shape index: {}]
  %s1 = inlined_call_operand.vmem [shape: bf16[392,32], index: 1, kind: input, shape index: {}]
  %s2 = inlined_call_operand.vmem [shape: f32[1,32], index: 2, kind: input, shape index: {}]
  %s3 = inlined_call_operand.vmem [shape: bf16[32,32], index: 3, kind: input, shape index: {}]
  %s4 = inlined_call_operand.vmem [shape: f32[1,32], index: 4, kind: input, shape index: {}]
  %s5 = inlined_call_operand.vmem [shape: bf16[32,2], index: 5, kind: input, shape index: {}]
  %s6 = inlined_call_operand.vmem [shape: f32[1,2], index: 6, kind: input, shape index: {}]
  %s7 = inlined_call_operand.hbm [shape: f32[2,2], index: 7, kind: output, shape index: {}]
  %s8 = sld [smem:[#allocation0]]
  $region38: #{mlp_forward_flat.1} parent=0
    _
  %s10 = ssub.s32 1, %s8
  %s11 = scalar_select 0, %s10, %s8
  $region1: #{mlp_forward_flat.1} parent=0
    #allocation2 [shape = 'u8[1024]{0}', space=vmem, size = 0x400, scoped, tag = 'output window, operand 0, single buffered']
    #allocation3 [shape = 's32[1]{0}', space=sflag, size = 0x4, scoped, tag = 'scoped memory for mlp_forward_flat.1']
    %12 = vsyncpa [#allocation3], 0
    // Predicated region
    $region2: #{mlp_forward_flat.1} parent=1 // pred_check
      _
    $region3: #{mlp_forward_flat.1} parent=1 // pred_check_branch
      %14 = sbr.rel (0) target = $region5
    $region4: #{mlp_forward_flat.1} parent=1 // pred_region
      _
    $region5: #{mlp_forward_flat.1} parent=1 // pred_fallthru
      _
    // Predicated region
    $region6: #{mlp_forward_flat.1} parent=1 // pred_check
      _
    $region7: #{mlp_forward_flat.1} parent=1 // pred_check_branch
      %16 = sbr.rel (0) target = $region9
    $region8: #{mlp_forward_flat.1} parent=1 // pred_region
      _
    $region9: #{mlp_forward_flat.1} parent=1 // pred_fallthru
      _
    // Predicated region
    $region10: #{mlp_forward_flat.1} parent=1 // pred_check
      _
    $region11: #{mlp_forward_flat.1} parent=1 // pred_check_branch
      %18 = sbr.rel (0) target = $region13
    $region12: #{mlp_forward_flat.1} parent=1 // pred_region
      _
    $region13: #{mlp_forward_flat.1} parent=1 // pred_fallthru
      _
    // Predicated region
    $region14: #{mlp_forward_flat.1} parent=1 // pred_check
      _
    $region15: #{mlp_forward_flat.1} parent=1 // pred_check_branch
      %20 = sbr.rel (0) target = $region17
    $region16: #{mlp_forward_flat.1} parent=1 // pred_region
      _
    $region17: #{mlp_forward_flat.1} parent=1 // pred_fallthru
      _
    // Predicated region
    $region18: #{mlp_forward_flat.1} parent=1 // pred_check
      _
    $region19: #{mlp_forward_flat.1} parent=1 // pred_check_branch
      %22 = sbr.rel (0) target = $region21
    $region20: #{mlp_forward_flat.1} parent=1 // pred_region
      _
    $region21: #{mlp_forward_flat.1} parent=1 // pred_fallthru
      _
    // Predicated region
    $region22: #{mlp_forward_flat.1} parent=1 // pred_check
      _
    $region23: #{mlp_forward_flat.1} parent=1 // pred_check_branch
      %24 = sbr.rel (0) target = $region25
    $region24: #{mlp_forward_flat.1} parent=1 // pred_region
      _
    $region25: #{mlp_forward_flat.1} parent=1 // pred_fallthru
      _
    // Predicated region
    $region26: #{mlp_forward_flat.1} parent=1 // pred_check
      _
    $region27: #{mlp_forward_flat.1} parent=1 // pred_check_branch
      %26 = sbr.rel (0) target = $region29
    $region28: #{mlp_forward_flat.1} parent=1 // pred_region
      _
    $region29: #{mlp_forward_flat.1} parent=1 // pred_fallthru
      _
    %v28 = vld [vmem:[%s0] sm:$0xff]
    %v30 = vcombine.high %v28, %v28
    %v32 = vunpack.c.l.s4 1983009808
    %v33 = vunpack.c.0.s8 %v32
    %v34 = vlaneseq
    %v35 = vshrl.u32 %v34, 7
    %v36 = vsub.s32 %v33, %v35
    %v37 = vrot.slane %v28, %v36
    %v39 = vunpack.c.l.s4 1983009808
    %v40 = vunpack.c.0.s8 %v39
    %v41 = vlaneseq
    %v42 = vshrl.u32 %v41, 7
    %v43 = vsub.s32 %v40, %v42
    %v44 = vrot.slane %v30, %v43
    %v45 = vcombine.high %v37, %v37
    %v46 = vcombine.high %v44, %v44
    %v51 = vpack.c.bf16 %v37, %v37
    %v52 = vpack.c.bf16 %v45, %v45
    %v53 = vpack.c.bf16 %v44, %v44
    %v54 = vpack.c.bf16 %v46, %v46
    %v55 = vld [vmem:[%s1] sm:$0xf]
    %v56 = vld [vmem:[%s1 + $0x4] sm:$0xf]
    %v57 = vld [vmem:[%s1 + $0x8] sm:$0xf]
    %v58 = vld [vmem:[%s1 + $0xc] sm:$0xf]
    %v59 = vld [vmem:[%s1 + $0x10] sm:$0xf]
    %v60 = vld [vmem:[%s1 + $0x14] sm:$0xf]
    %v61 = vld [vmem:[%s1 + $0x18] sm:$0xf]
    %v62 = vld [vmem:[%s1 + $0x1c] sm:$0xf]
    %v63 = vld [vmem:[%s1 + $0x20] sm:$0xf]
    %v64 = vld [vmem:[%s1 + $0x24] sm:$0xf]
    %v65 = vld [vmem:[%s1 + $0x28] sm:$0xf]
    %v66 = vld [vmem:[%s1 + $0x2c] sm:$0xf]
    %v67 = vld [vmem:[%s1 + $0x30] sm:$0xf]
    %v68 = vld [vmem:[%s1 + $0x34] sm:$0xf]
    %v69 = vld [vmem:[%s1 + $0x38] sm:$0xf]
    %v70 = vld [vmem:[%s1 + $0x3c] sm:$0xf]
    %v71 = vld [vmem:[%s1 + $0x40] sm:$0xf]
    %v72 = vld [vmem:[%s1 + $0x44] sm:$0xf]
    %v73 = vld [vmem:[%s1 + $0x48] sm:$0xf]
    %v74 = vld [vmem:[%s1 + $0x4c] sm:$0xf]
    %v75 = vld [vmem:[%s1 + $0x50] sm:$0xf]
    %v76 = vld [vmem:[%s1 + $0x54] sm:$0xf]
    %v77 = vld [vmem:[%s1 + $0x58] sm:$0xf]
    %v78 = vld [vmem:[%s1 + $0x5c] sm:$0xf]
    %v79 = vld [vmem:[%s1 + $0x60] sm:$0xf]
    %v80 = vld [vmem:[%s1 + $0x64] sm:$0xf]
    %v81 = vld [vmem:[%s1 + $0x68] sm:$0xf]
    %v82 = vld [vmem:[%s1 + $0x6c] sm:$0xf]
    %v83 = vld [vmem:[%s1 + $0x70] sm:$0xf]
    %v84 = vld [vmem:[%s1 + $0x74] sm:$0xf]
    %v85 = vld [vmem:[%s1 + $0x78] sm:$0xf]
    %v86 = vld [vmem:[%s1 + $0x7c] sm:$0xf]
    %v87 = vld [vmem:[%s1 + $0x80] sm:$0xf]
    %v88 = vld [vmem:[%s1 + $0x84] sm:$0xf]
    %v89 = vld [vmem:[%s1 + $0x88] sm:$0xf]
    %v90 = vld [vmem:[%s1 + $0x8c] sm:$0xf]
    %v91 = vld [vmem:[%s1 + $0x90] sm:$0xf]
    %v92 = vld [vmem:[%s1 + $0x94] sm:$0xf]
    %v93 = vld [vmem:[%s1 + $0x98] sm:$0xf]
    %v94 = vld [vmem:[%s1 + $0x9c] sm:$0xf]
    %v95 = vld [vmem:[%s1 + $0xa0] sm:$0xf]
    %v96 = vld [vmem:[%s1 + $0xa4] sm:$0xf]
    %v97 = vld [vmem:[%s1 + $0xa8] sm:$0xf]
    %v98 = vld [vmem:[%s1 + $0xac] sm:$0xf]
    %v99 = vld [vmem:[%s1 + $0xb0] sm:$0xf]
    %v100 = vld [vmem:[%s1 + $0xb4] sm:$0xf]
    %v101 = vld [vmem:[%s1 + $0xb8] sm:$0xf]
    %v102 = vld [vmem:[%s1 + $0xbc] sm:$0xf]
    %v103 = vld [vmem:[%s1 + $0xc0] sm:$0xf]
    %v104 = vld [vmem:[%s2] sm:$0x1]
    %v106 = vlaneseq
    %v107 = vshrl.u32 %v106, 7
    %v108 = vsub.s32 0, %v107
    %v109 = vrot.slane %v104, %v108
    %v160 = vunpack.c.l.b16 %v55
    %v161 = vunpack.c.l.b16 %v56
    %v162 = vunpack.c.l.b16 %v57
    %v163 = vunpack.c.l.b16 %v58
    %v164 = vunpack.c.l.b16 %v59
    %v165 = vunpack.c.l.b16 %v60
    %v166 = vunpack.c.l.b16 %v61
    %v167 = vunpack.c.l.b16 %v62
    %v168 = vunpack.c.l.b16 %v63
    %v169 = vunpack.c.l.b16 %v64
    %v170 = vunpack.c.l.b16 %v65
    %v171 = vunpack.c.l.b16 %v66
    %v172 = vunpack.c.l.b16 %v67
    %v173 = vunpack.c.l.b16 %v68
    %v174 = vunpack.c.l.b16 %v69
    %v175 = vunpack.c.l.b16 %v70
    %v176 = vunpack.c.l.b16 %v71
    %v177 = vunpack.c.l.b16 %v72
    %v178 = vunpack.c.l.b16 %v73
    %v179 = vunpack.c.l.b16 %v74
    %v180 = vunpack.c.l.b16 %v75
    %v181 = vunpack.c.l.b16 %v76
    %v182 = vunpack.c.l.b16 %v77
    %v183 = vunpack.c.l.b16 %v78
    %v184 = vunpack.c.l.b16 %v79
    %v185 = vunpack.c.l.b16 %v80
    %v186 = vunpack.c.l.b16 %v81
    %v187 = vunpack.c.l.b16 %v82
    %v188 = vunpack.c.l.b16 %v83
    %v189 = vunpack.c.l.b16 %v84
    %v190 = vunpack.c.l.b16 %v85
    %v191 = vunpack.c.l.b16 %v86
    %v192 = vunpack.c.l.b16 %v87
    %v193 = vunpack.c.l.b16 %v88
    %v194 = vunpack.c.l.b16 %v89
    %v195 = vunpack.c.l.b16 %v90
    %v196 = vunpack.c.l.b16 %v91
    %v197 = vunpack.c.l.b16 %v92
    %v198 = vunpack.c.l.b16 %v93
    %v199 = vunpack.c.l.b16 %v94
    %v200 = vunpack.c.l.b16 %v95
    %v201 = vunpack.c.l.b16 %v96
    %v202 = vunpack.c.l.b16 %v97
    %v203 = vunpack.c.l.b16 %v98
    %v204 = vunpack.c.l.b16 %v99
    %v205 = vunpack.c.l.b16 %v100
    %v206 = vunpack.c.l.b16 %v101
    %v207 = vunpack.c.l.b16 %v102
    %v208 = vunpack.c.l.b16 %v103
    %v209 = vpack.c.b16 %v161, %v160
    %v210 = vpack.c.b16 %v163, %v162
    %v211 = vpack.c.b16 %v165, %v164
    %v212 = vpack.c.b16 %v167, %v166
    %v213 = vpack.c.b16 %v169, %v168
    %v214 = vpack.c.b16 %v171, %v170
    %v215 = vpack.c.b16 %v173, %v172
    %v216 = vpack.c.b16 %v175, %v174
    %v217 = vpack.c.b16 %v177, %v176
    %v218 = vpack.c.b16 %v179, %v178
    %v219 = vpack.c.b16 %v181, %v180
    %v220 = vpack.c.b16 %v183, %v182
    %v221 = vpack.c.b16 %v185, %v184
    %v222 = vpack.c.b16 %v187, %v186
    %v223 = vpack.c.b16 %v189, %v188
    %v224 = vpack.c.b16 %v191, %v190
    %v225 = vpack.c.b16 %v193, %v192
    %v226 = vpack.c.b16 %v195, %v194
    %v227 = vpack.c.b16 %v197, %v196
    %v228 = vpack.c.b16 %v199, %v198
    %v229 = vpack.c.b16 %v201, %v200
    %v230 = vpack.c.b16 %v203, %v202
    %v231 = vpack.c.b16 %v205, %v204
    %v232 = vpack.c.b16 %v207, %v206
    %v233 = vpack.c.b16 %v208, %v208
    %vm258 = vcmask 64512
    %v260 = vsel %vm258, %v54, 0
    %vm262 = vcmask 1043456
    %v264 = vsel %vm262, %v233, 0
    %266 = vmatprep.subr.bf16.mxu0 0
    %267 = vmatpush1.bf16.msra.mxu0 %v209
    %268 = vmatprep.subr.bf16.mxu0 0
    %269 = vmatpush1.bf16.msra.mxu0 %v210
    %270 = vmatprep.subr.bf16.mxu0 0
    %271 = vmatpush1.bf16.msra.mxu0 %v211
    %272 = vmatprep.subr.bf16.mxu0 0
    %273 = vmatpush1.bf16.msra.mxu0 %v212
    %274 = vmatprep.subr.bf16.mxu0 0
    %275 = vmatpush1.bf16.msra.mxu0 %v213
    %276 = vmatprep.subr.bf16.mxu0 0
    %277 = vmatpush1.bf16.msra.mxu0 %v214
    %278 = vmatprep.subr.bf16.mxu0 0
    %279 = vmatpush1.bf16.msra.mxu0 %v215
    %280 = vmatprep.subr.bf16.mxu0 0
    %281 = vmatpush1.bf16.msra.mxu0 %v216
    %282 = vmatprep.subr.bf16.mxu0 0
    %283 = vmatpush1.bf16.msra.mxu0 %v217
    %284 = vmatprep.subr.bf16.mxu0 0
    %285 = vmatpush1.bf16.msra.mxu0 %v218
    %286 = vmatprep.subr.bf16.mxu0 0
    %287 = vmatpush1.bf16.msra.mxu0 %v219
    %288 = vmatprep.subr.bf16.mxu0 0
    %289 = vmatpush1.bf16.msra.mxu0 %v220
    %290 = vmatprep.subr.bf16.mxu0 0
    %291 = vmatpush1.bf16.msra.mxu0 %v221
    %292 = vmatprep.subr.bf16.mxu0 0
    %293 = vmatpush1.bf16.msra.mxu0 %v222
    %294 = vmatprep.subr.bf16.mxu0 0
    %295 = vmatpush1.bf16.msra.mxu0 %v223
    %296 = vmatprep.subr.bf16.mxu0 0
    %297 = vmatpush1.bf16.msra.mxu0 %v224
    %298 = vmatprep.mubr.bf16.mxu0 %v52
    %299 = vmatmul.mubr.bf16.gmra.mrb[0].mxu0 %v51
    %v300 = vpop.f32.mrb[0].mxu0
    %v301 = vadd.f32 %v109, %v300
    %v302 = vpop.f32.mrb[0].mxu0
    %v303 = vpop.f32.mrb[0].mxu0
    %v304 = vpop.f32.mrb[0].mxu0
    %305 = vdwg.mxu0
    %306 = vmatprep.subr.bf16.mxu0 0
    %307 = vmatpush1.bf16.msra.mxu0 %v225
    %308 = vmatprep.subr.bf16.mxu0 0
    %309 = vmatpush1.bf16.msra.mxu0 %v226
    %310 = vmatprep.subr.bf16.mxu0 0
    %311 = vmatpush1.bf16.msra.mxu0 %v227
    %312 = vmatprep.subr.bf16.mxu0 0
    %313 = vmatpush1.bf16.msra.mxu0 %v228
    %314 = vmatprep.subr.bf16.mxu0 0
    %315 = vmatpush1.bf16.msra.mxu0 %v229
    %316 = vmatprep.subr.bf16.mxu0 0
    %317 = vmatpush1.bf16.msra.mxu0 %v230
    %318 = vmatprep.subr.bf16.mxu0 0
    %319 = vmatpush1.bf16.msra.mxu0 %v231
    %320 = vmatprep.subr.bf16.mxu0 0
    %321 = vmatpush1.bf16.msra.mxu0 %v232
    %322 = vmatprep.subr.bf16.mxu0 0
    %323 = vmatpush1.bf16.msra.mxu0 %v264
    %324 = vmatprep.subr.bf16.mxu0 0
    %325 = vmatpush1.bf16.msra.mxu0 0
    %326 = vmatprep.subr.bf16.mxu0 0
    %327 = vmatpush1.bf16.msra.mxu0 0
    %328 = vmatprep.subr.bf16.mxu0 0
    %329 = vmatpush1.bf16.msra.mxu0 0
    %330 = vmatprep.subr.bf16.mxu0 0
    %331 = vmatpush1.bf16.msra.mxu0 0
    %332 = vmatprep.subr.bf16.mxu0 0
    %333 = vmatpush1.bf16.msra.mxu0 0
    %334 = vmatprep.subr.bf16.mxu0 0
    %335 = vmatpush1.bf16.msra.mxu0 0
    %336 = vmatprep.subr.bf16.mxu0 0
    %337 = vmatpush1.bf16.msra.mxu0 0
    %338 = vmatprep.mubr.bf16.mxu0 %v260
    %339 = vmatmul.mubr.bf16.gmra.mrb[0].mxu0 %v53
    %v340 = vpop.f32.mrb[0].mxu0
    %v341 = vadd.f32 %v301, %v340
    %v342 = vpop.f32.mrb[0].mxu0
    %v343 = vpop.f32.mrb[0].mxu0
    %v344 = vpop.f32.mrb[0].mxu0
    %345 = vdwg.mxu0
    %v346 = vmax.f32 %v341, 0.0
    %v347 = vpack.c.bf16 %v346, %v346
    %v348 = vld [vmem:[%s3] sm:$0xf]
    %v349 = vld [vmem:[%s3 + $0x4] sm:$0xf]
    %v350 = vld [vmem:[%s3 + $0x8] sm:$0xf]
    %v351 = vld [vmem:[%s3 + $0xc] sm:$0xf]
    %v352 = vld [vmem:[%s4] sm:$0x1]
    %v354 = vlaneseq
    %v355 = vshrl.u32 %v354, 7
    %v356 = vsub.s32 0, %v355
    %v357 = vrot.slane %v352, %v356
    %v363 = vunpack.c.l.b16 %v348
    %v364 = vunpack.c.l.b16 %v349
    %v365 = vunpack.c.l.b16 %v350
    %v366 = vunpack.c.l.b16 %v351
    %v367 = vpack.c.b16 %v364, %v363
    %v368 = vpack.c.b16 %v366, %v365
    %vm371 = vcmask 261120
    %v373 = vsel %vm371, %v347, 0
    %375 = vmatprep.subr.bf16.mxu0 0
    %376 = vmatpush1.bf16.msra.mxu0 %v367
    %377 = vmatprep.subr.bf16.mxu0 0
    %378 = vmatpush1.bf16.msra.mxu0 %v368
    %379 = vmatprep.subr.bf16.mxu0 0
    %380 = vmatpush1.bf16.msra.mxu0 0
    %381 = vmatprep.subr.bf16.mxu0 0
    %382 = vmatpush1.bf16.msra.mxu0 0
    %383 = vmatprep.subr.bf16.mxu0 0
    %384 = vmatpush1.bf16.msra.mxu0 0
    %385 = vmatprep.subr.bf16.mxu0 0
    %386 = vmatpush1.bf16.msra.mxu0 0
    %387 = vmatprep.subr.bf16.mxu0 0
    %388 = vmatpush1.bf16.msra.mxu0 0
    %389 = vmatprep.subr.bf16.mxu0 0
    %390 = vmatpush1.bf16.msra.mxu0 0
    %391 = vmatprep.subr.bf16.mxu0 0
    %392 = vmatpush1.bf16.msra.mxu0 0
    %393 = vmatprep.subr.bf16.mxu0 0
    %394 = vmatpush1.bf16.msra.mxu0 0
    %395 = vmatprep.subr.bf16.mxu0 0
    %396 = vmatpush1.bf16.msra.mxu0 0
    %397 = vmatprep.subr.bf16.mxu0 0
    %398 = vmatpush1.bf16.msra.mxu0 0
    %399 = vmatprep.subr.bf16.mxu0 0
    %400 = vmatpush1.bf16.msra.mxu0 0
    %401 = vmatprep.subr.bf16.mxu0 0
    %402 = vmatpush1.bf16.msra.mxu0 0
    %403 = vmatprep.subr.bf16.mxu0 0
    %404 = vmatpush1.bf16.msra.mxu0 0
    %405 = vmatprep.subr.bf16.mxu0 0
    %406 = vmatpush1.bf16.msra.mxu0 0
    %407 = vmatprep.mubr.bf16.mxu0 0
    %408 = vmatmul.mubr.bf16.gmra.mrb[0].mxu0 %v373
    %v409 = vpop.f32.mrb[0].mxu0
    %v410 = vadd.f32 %v357, %v409
    %v411 = vpop.f32.mrb[0].mxu0
    %v412 = vpop.f32.mrb[0].mxu0
    %v413 = vpop.f32.mrb[0].mxu0
    %414 = vdwg.mxu0
    %v415 = vmax.f32 %v410, 0.0
    %v416 = vpack.c.bf16 %v415, %v415
    %v417 = vld [vmem:[%s5] sm:$0xf]
    %v418 = vld [vmem:[%s5 + $0x4] sm:$0xf]
    %v419 = vld [vmem:[%s5 + $0x8] sm:$0xf]
    %v420 = vld [vmem:[%s5 + $0xc] sm:$0xf]
    %v421 = vld [vmem:[%s6] sm:$0x1]
    %v423 = vlaneseq
    %v424 = vshrl.u32 %v423, 7
    %v425 = vsub.s32 0, %v424
    %v426 = vrot.slane %v421, %v425
    %v432 = vunpack.c.l.b16 %v417
    %v433 = vunpack.c.l.b16 %v418
    %v434 = vunpack.c.l.b16 %v419
    %v435 = vunpack.c.l.b16 %v420
    %v436 = vpack.c.b16 %v433, %v432
    %v437 = vpack.c.b16 %v435, %v434
    %v441 = vsel %vm371, %v416, 0
    %443 = vmatprep.subr.bf16.mxu0 0
    %444 = vmatpush1.bf16.msra.mxu0 %v436
    %445 = vmatprep.subr.bf16.mxu0 0
    %446 = vmatpush1.bf16.msra.mxu0 %v437
    %447 = vmatprep.subr.bf16.mxu0 0
    %448 = vmatpush1.bf16.msra.mxu0 0
    %449 = vmatprep.subr.bf16.mxu0 0
    %450 = vmatpush1.bf16.msra.mxu0 0
    %451 = vmatprep.subr.bf16.mxu0 0
    %452 = vmatpush1.bf16.msra.mxu0 0
    %453 = vmatprep.subr.bf16.mxu0 0
    %454 = vmatpush1.bf16.msra.mxu0 0
    %455 = vmatprep.subr.bf16.mxu0 0
    %456 = vmatpush1.bf16.msra.mxu0 0
    %457 = vmatprep.subr.bf16.mxu0 0
    %458 = vmatpush1.bf16.msra.mxu0 0
    %459 = vmatprep.subr.bf16.mxu0 0
    %460 = vmatpush1.bf16.msra.mxu0 0
    %461 = vmatprep.subr.bf16.mxu0 0
    %462 = vmatpush1.bf16.msra.mxu0 0
    %463 = vmatprep.subr.bf16.mxu0 0
    %464 = vmatpush1.bf16.msra.mxu0 0
    %465 = vmatprep.subr.bf16.mxu0 0
    %466 = vmatpush1.bf16.msra.mxu0 0
    %467 = vmatprep.subr.bf16.mxu0 0
    %468 = vmatpush1.bf16.msra.mxu0 0
    %469 = vmatprep.subr.bf16.mxu0 0
    %470 = vmatpush1.bf16.msra.mxu0 0
    %471 = vmatprep.subr.bf16.mxu0 0
    %472 = vmatpush1.bf16.msra.mxu0 0
    %473 = vmatprep.subr.bf16.mxu0 0
    %474 = vmatpush1.bf16.msra.mxu0 0
    %475 = vmatprep.mubr.bf16.mxu0 0
    %476 = vmatmul.mubr.bf16.gmra.mrb[0].mxu0 %v441
    %v477 = vpop.f32.mrb[0].mxu0
    %v478 = vadd.f32 %v426, %v477
    %v479 = vpop.f32.mrb[0].mxu0
    %v480 = vpop.f32.mrb[0].mxu0
    %v481 = vpop.f32.mrb[0].mxu0
    %482 = vdwg.mxu0
    %vm483 = vcmask 9216
    %484 = vst.msk [vmem:[#allocation2] sm:$0x3] %vm483, %v478
    // Predicated region
    $region30: #{mlp_forward_flat.1} parent=1 // pred_check
      _
    $region31: #{mlp_forward_flat.1} parent=1 // pred_check_branch
      %486 = sbr.rel (0) target = $region33
    $region32: #{mlp_forward_flat.1} parent=1 // pred_region
      %s488 = ssub.s32 32, 32
      %489 = vsyncadd [#allocation3], %s488
      %s491 = sshll.u32 [#allocation2], 4
      %s492 = int_to_ptr.vmem [resolvable:$true] %s491
      %494 = dma.vmem_to_hbm [thread:$0]  %s492, 32, %s7, [#allocation3]
    $region33: #{mlp_forward_flat.1} parent=1 // pred_fallthru
      _
    // Predicated region
    $region34: #{mlp_forward_flat.1} parent=1 // pred_check
      _
    $region35: #{mlp_forward_flat.1} parent=1 // pred_check_branch
      %496 = sbr.rel (0) target = $region37
    $region36: #{mlp_forward_flat.1} parent=1 // pred_region
      %497 = dma.done [#allocation3], 32
    $region37: #{mlp_forward_flat.1} parent=1 // pred_fallthru
      _
    %498 = vsyncpa [#allocation3], 1

</llo_original>
